<compile_context>
chip_gen: v7x
topology: tpu7x:2x2x1
jax: 0.10.0
libtpu: 0.0.40
codegen_flags: <defaults>
</compile_context>

<pallas_src>
import jax
import jax.numpy as jnp
from jax.experimental import pallas as pl
from jax.experimental.pallas import tpu as pltpu

LANE = 128  # lane width; fused latent projection is padded to this


def vae_forward_kernel(
    x_ref, w1_ref, b1_ref, wml_ref, bml_ref, eps_ref,
    w2_ref, b2_ref, w3_ref, b3_ref,
    xhat_ref, muvar_ref,
):
    L = eps_ref.shape[-1]

    # ---- encoder layer 1: bf16 MXU inputs, f32 accumulate ----
    x_bf = x_ref[...].astype(jnp.bfloat16)
    h = jnp.dot(x_bf, w1_ref[...], preferred_element_type=jnp.float32) + b1_ref[...]
    h = jnp.maximum(h, 0.0)                                   # ReLU (f32 VPU)

    # ---- fused (mu | logVar | zero-pad) projection: one lane-dense matmul ----
    muvar = jnp.dot(h, wml_ref[...], preferred_element_type=jnp.float32) + bml_ref[...]
    muvar_ref[...] = muvar                                    # unmasked [BP, 128] store

    mu = muvar[:, :L]
    logvar = muvar[:, L:2 * L]

    # ---- reparameterization: z = mu + exp(0.5*logVar) * eps (f32 elementwise) ----
    std = jnp.exp(0.5 * logvar)
    z = mu + std * eps_ref[...]

    # ---- decoder ----
    h2 = jnp.dot(z, w2_ref[...], preferred_element_type=jnp.float32) + b2_ref[...]
    h2 = jnp.maximum(h2, 0.0)                                 # ReLU
    logits = jnp.dot(h2.astype(jnp.bfloat16), w3_ref[...],
                     preferred_element_type=jnp.float32) + b3_ref[...]
    # sigmoid via exp (EUP) + approx reciprocal (EUP) -> frees VALU slots
    xhat_ref[...] = pl.reciprocal(1.0 + jnp.exp(-logits), approx=True)


def vae_forward(x_nchw, params, eps):
    """Fused VAE forward. x_nchw: [B, C, H, W] f32; eps: [B, L] f32."""
    B = x_nchw.shape[0]
    D = x_nchw.shape[1] * x_nchw.shape[2] * x_nchw.shape[3]
    HIDDEN = params["w1"].shape[1]
    L = params["wmu"].shape[1]
    assert 2 * L <= LANE

    x2d = x_nchw.reshape(B, D)  # glue: flatten NCHW -> [B, D]

    # Pad batch to a multiple of 8 sublanes (min 8) so vregs/MXU rows are full.
    BP = max(8, -(-B // 8) * 8)
    pad = BP - B
    if pad:
        x2d = jnp.pad(x2d, ((0, pad), (0, 0)))
        eps_p = jnp.pad(eps, ((0, pad), (0, 0)))
    else:
        eps_p = eps

    # Fuse Wmu|Wlv into one lane-padded [HIDDEN, 128] weight (zeros elsewhere).
    wml = jnp.zeros((HIDDEN, LANE), jnp.float32)
    wml = wml.at[:, :L].set(params["wmu"]).at[:, L:2 * L].set(params["wlv"])
    bml = jnp.zeros((1, LANE), jnp.float32)
    bml = bml.at[:, :L].set(params["bmu"]).at[:, L:2 * L].set(params["blv"])

    # bf16 for the two big weights (dominant HBM->VMEM bytes); small ones stay f32.
    w1_bf = params["w1"].astype(jnp.bfloat16)
    w3_bf = params["w3"].astype(jnp.bfloat16)

    args = (
        x2d, w1_bf, params["b1"], wml, bml, eps_p,
        params["w2"], params["b2"], w3_bf, params["b3"],
    )

    vmem = pl.BlockSpec(memory_space=pltpu.MemorySpace.VMEM)

    flops = 2 * BP * (D * HIDDEN + HIDDEN * LANE + L * HIDDEN + HIDDEN * D)
    transcendentals = BP * (L + D)                       # exp(0.5*logvar) + sigmoid exp
    bytes_accessed = (sum(int(a.size) * a.dtype.itemsize for a in args)
                      + BP * D * 4 + BP * LANE * 4)      # + outputs

    x_hat, muvar = pl.pallas_call(
        vae_forward_kernel,
        out_shape=(
            jax.ShapeDtypeStruct((BP, D), jnp.float32),
            jax.ShapeDtypeStruct((BP, LANE), jnp.float32),
        ),
        in_specs=[vmem] * len(args),
        out_specs=(vmem, vmem),
        cost_estimate=pl.CostEstimate(
            flops=flops,
            transcendentals=transcendentals,
            bytes_accessed=bytes_accessed,
        ),
    )(*args)

    # glue: drop padding rows, unpack the fused latent slab, restore NCHW.
    x_hat = x_hat[:B].reshape(x_nchw.shape)
    mu = muvar[:B, :L]
    logvar = muvar[:B, L:2 * L]
    return x_hat, mu, logvar


def init_params(key, d_in, hidden, latent):
    """Deterministic nn.Linear-style init (uniform +-1/sqrt(fan_in))."""
    def linear(k, fan_in, fan_out):
        kw, kb = jax.random.split(k)
        bound = 1.0 / jnp.sqrt(fan_in)
        w = jax.random.uniform(kw, (fan_in, fan_out), jnp.float32, -bound, bound)
        b = jax.random.uniform(kb, (1, fan_out), jnp.float32, -bound, bound)
        return w, b

    k1, k2, k3, k4, k5 = jax.random.split(key, 5)
    w1, b1 = linear(k1, d_in, hidden)
    wmu, bmu = linear(k2, hidden, latent)
    wlv, blv = linear(k3, hidden, latent)
    w2, b2 = linear(k4, latent, hidden)
    w3, b3 = linear(k5, hidden, d_in)
    return dict(w1=w1, b1=b1, wmu=wmu, bmu=bmu, wlv=wlv, blv=blv,
                w2=w2, b2=b2, w3=w3, b3=b3)


if __name__ == "__main__":
    key = jax.random.PRNGKey(0)
    k_x, k_p, k_eps = jax.random.split(key, 3)

    # Small shapes consistent with an image VAE: batch=2, channels=4, spatial=16.
    B, C, H, W = 2, 4, 16, 16
    D = C * H * W
    HIDDEN, LATENT = 32, 8

    x = jax.random.normal(k_x, (B, C, H, W), jnp.float32)
    params = init_params(k_p, D, HIDDEN, LATENT)
    # eps ~ N(0,1) (torch.randn_like equivalent), generated deterministically.
    eps = jax.random.normal(k_eps, (B, LATENT), jnp.float32)

    x_hat, mu, logvar = vae_forward(x, params, eps)
    jax.block_until_ready((x_hat, mu, logvar))

    # Sanity check against a pure-f32 JAX reference. The kernel uses bf16 inputs
    # for the two large matmuls, so tolerances are bf16-appropriate.
    x2d = x.reshape(B, D)
    h = jnp.maximum(x2d @ params["w1"] + params["b1"], 0.0)
    mu_ref = h @ params["wmu"] + params["bmu"]
    lv_ref = h @ params["wlv"] + params["blv"]
    z_ref = mu_ref + jnp.exp(0.5 * lv_ref) * eps
    h2 = jnp.maximum(z_ref @ params["w2"] + params["b2"], 0.0)
    xh_ref = jax.nn.sigmoid(h2 @ params["w3"] + params["b3"]).reshape(B, C, H, W)

    assert jnp.allclose(mu, mu_ref, atol=3e-2, rtol=3e-2)
    assert jnp.allclose(logvar, lv_ref, atol=3e-2, rtol=3e-2)
    assert jnp.allclose(x_hat, xh_ref, atol=3e-2, rtol=3e-2)

    print("KERNEL_OK")
</pallas_src>

<mosaic_0001>
module attributes {stable_mosaic.version = 11 : i64} {
  func.func @vae_forward_kernel(%arg0: memref<8x1024xf32, #tpu.memory_space<vmem>>, %arg1: memref<1024x32xbf16, #tpu.memory_space<vmem>>, %arg2: memref<1x32xf32, #tpu.memory_space<vmem>>, %arg3: memref<32x128xf32, #tpu.memory_space<vmem>>, %arg4: memref<1x128xf32, #tpu.memory_space<vmem>>, %arg5: memref<8x8xf32, #tpu.memory_space<vmem>>, %arg6: memref<8x32xf32, #tpu.memory_space<vmem>>, %arg7: memref<1x32xf32, #tpu.memory_space<vmem>>, %arg8: memref<32x1024xbf16, #tpu.memory_space<vmem>>, %arg9: memref<1x1024xf32, #tpu.memory_space<vmem>>, %arg10: memref<8x1024xf32, #tpu.memory_space<vmem>>, %arg11: memref<8x128xf32, #tpu.memory_space<vmem>>) attributes {dimension_semantics = [], scalar_prefetch = 0 : i64, scratch_operands = 0 : i64, tpu.core_type = #tpu.core_type<tc>} {
    %c0 = arith.constant 0 : index
    %c0_0 = arith.constant 0 : index
    %0 = vector.load %arg0[%c0, %c0_0] : memref<8x1024xf32, #tpu.memory_space<vmem>>, vector<8x1024xf32>
    %1 = arith.truncf %0 : vector<8x1024xf32> to vector<8x1024xbf16>
    %c0_1 = arith.constant 0 : index
    %c0_2 = arith.constant 0 : index
    %2 = vector.load %arg1[%c0_1, %c0_2] : memref<1024x32xbf16, #tpu.memory_space<vmem>>, vector<1024x32xbf16>
    %cst = arith.constant dense<0.000000e+00> : vector<8x32xf32>
    %3 = tpu.matmul %1, %2, %cst {dimension_numbers = #tpu.dot_dimension_numbers<[1], [0], [0], [1], [0, 0, 1, 1], [], []>} : vector<8x1024xbf16>, vector<1024x32xbf16>, vector<8x32xf32> -> vector<8x32xf32>
    %c0_3 = arith.constant 0 : index
    %c0_4 = arith.constant 0 : index
    %4 = vector.load %arg2[%c0_3, %c0_4] : memref<1x32xf32, #tpu.memory_space<vmem>>, vector<1x32xf32>
    %5 = vector.broadcast %4 : vector<1x32xf32> to vector<8x32xf32>
    %6 = arith.addf %3, %5 : vector<8x32xf32>
    %cst_5 = arith.constant 0.000000e+00 : f32
    %7 = vector.broadcast %cst_5 : f32 to vector<8x32xf32>
    %8 = arith.maximumf %6, %7 : vector<8x32xf32>
    %c0_6 = arith.constant 0 : index
    %c0_7 = arith.constant 0 : index
    %9 = vector.load %arg3[%c0_6, %c0_7] : memref<32x128xf32, #tpu.memory_space<vmem>>, vector<32x128xf32>
    %cst_8 = arith.constant dense<0.000000e+00> : vector<8x128xf32>
    %10 = tpu.matmul %8, %9, %cst_8 {dimension_numbers = #tpu.dot_dimension_numbers<[1], [0], [0], [1], [0, 0, 1, 1], [], []>} : vector<8x32xf32>, vector<32x128xf32>, vector<8x128xf32> -> vector<8x128xf32>
    %c0_9 = arith.constant 0 : index
    %c0_10 = arith.constant 0 : index
    %11 = vector.load %arg4[%c0_9, %c0_10] : memref<1x128xf32, #tpu.memory_space<vmem>>, vector<1x128xf32>
    %12 = vector.broadcast %11 : vector<1x128xf32> to vector<8x128xf32>
    %13 = arith.addf %10, %12 : vector<8x128xf32>
    %c0_11 = arith.constant 0 : index
    %c0_12 = arith.constant 0 : index
    %14 = vector.load %arg11[%c0_11, %c0_12] : memref<8x128xf32, #tpu.memory_space<vmem>>, vector<8x128xf32>
    tpu.vector_store %arg11[%c0_11, %c0_12], %13 {strides = array<i32>} : memref<8x128xf32, #tpu.memory_space<vmem>>, vector<8x128xf32>,
    %15 = vector.extract_strided_slice %13 {offsets = [0, 0], sizes = [8, 8], strides = [1, 1]} : vector<8x128xf32> to vector<8x8xf32>
    %16 = vector.extract_strided_slice %13 {offsets = [0, 8], sizes = [8, 8], strides = [1, 1]} : vector<8x128xf32> to vector<8x8xf32>
    %cst_13 = arith.constant 5.000000e-01 : f32
    %17 = vector.broadcast %cst_13 : f32 to vector<8x8xf32>
    %18 = arith.mulf %17, %16 : vector<8x8xf32>
    %19 = math.exp %18 : vector<8x8xf32>
    %c0_14 = arith.constant 0 : index
    %c0_15 = arith.constant 0 : index
    %20 = vector.load %arg5[%c0_14, %c0_15] : memref<8x8xf32, #tpu.memory_space<vmem>>, vector<8x8xf32>
    %21 = arith.mulf %19, %20 : vector<8x8xf32>
    %22 = arith.addf %15, %21 : vector<8x8xf32>
    %c0_16 = arith.constant 0 : index
    %c0_17 = arith.constant 0 : index
    %23 = vector.load %arg6[%c0_16, %c0_17] : memref<8x32xf32, #tpu.memory_space<vmem>>, vector<8x32xf32>
    %cst_18 = arith.constant dense<0.000000e+00> : vector<8x32xf32>
    %24 = tpu.matmul %22, %23, %cst_18 {dimension_numbers = #tpu.dot_dimension_numbers<[1], [0], [0], [1], [0, 0, 1, 1], [], []>} : vector<8x8xf32>, vector<8x32xf32>, vector<8x32xf32> -> vector<8x32xf32>
    %c0_19 = arith.constant 0 : index
    %c0_20 = arith.constant 0 : index
    %25 = vector.load %arg7[%c0_19, %c0_20] : memref<1x32xf32, #tpu.memory_space<vmem>>, vector<1x32xf32>
    %26 = vector.broadcast %25 : vector<1x32xf32> to vector<8x32xf32>
    %27 = arith.addf %24, %26 : vector<8x32xf32>
    %cst_21 = arith.constant 0.000000e+00 : f32
    %28 = vector.broadcast %cst_21 : f32 to vector<8x32xf32>
    %29 = arith.maximumf %27, %28 : vector<8x32xf32>
    %30 = arith.truncf %29 : vector<8x32xf32> to vector<8x32xbf16>
    %c0_22 = arith.constant 0 : index
    %c0_23 = arith.constant 0 : index
    %31 = vector.load %arg8[%c0_22, %c0_23] : memref<32x1024xbf16, #tpu.memory_space<vmem>>, vector<32x1024xbf16>
    %cst_24 = arith.constant dense<0.000000e+00> : vector<8x1024xf32>
    %32 = tpu.matmul %30, %31, %cst_24 {dimension_numbers = #tpu.dot_dimension_numbers<[1], [0], [0], [1], [0, 0, 1, 1], [], []>} : vector<8x32xbf16>, vector<32x1024xbf16>, vector<8x1024xf32> -> vector<8x1024xf32>
    %c0_25 = arith.constant 0 : index
    %c0_26 = arith.constant 0 : index
    %33 = vector.load %arg9[%c0_25, %c0_26] : memref<1x1024xf32, #tpu.memory_space<vmem>>, vector<1x1024xf32>
    %34 = vector.broadcast %33 : vector<1x1024xf32> to vector<8x1024xf32>
    %35 = arith.addf %32, %34 : vector<8x1024xf32>
    %cst_27 = arith.constant 0.000000e+00 : f32
    %36 = vector.broadcast %cst_27 : f32 to vector<8x1024xf32>
    %37 = arith.subf %36, %35 : vector<8x1024xf32>
    %38 = math.exp %37 : vector<8x1024xf32>
    %cst_28 = arith.constant 1.000000e+00 : f32
    %39 = vector.broadcast %cst_28 : f32 to vector<8x1024xf32>
    %40 = arith.addf %39, %38 : vector<8x1024xf32>
    %41 = tpu.reciprocal %40 {approx = true} : vector<8x1024xf32> -> vector<8x1024xf32>
    %c0_29 = arith.constant 0 : index
    %c0_30 = arith.constant 0 : index
    %42 = vector.load %arg10[%c0_29, %c0_30] : memref<8x1024xf32, #tpu.memory_space<vmem>>, vector<8x1024xf32>
    tpu.vector_store %arg10[%c0_29, %c0_30], %41 {strides = array<i32>} : memref<8x1024xf32, #tpu.memory_space<vmem>>, vector<8x1024xf32>,
    return
  }
}

</mosaic_0001>

<llo_original>
// kernel: tpu_custom_call.1
$region0: #{tpu_custom_call.1}
  #allocation0 [shape = 'u32[]', space=smem, size = 0x4, offset = 0x4, fixed_abs, tag = 'smem constant byte address 0x4 - core index']
  #allocation1 [shape = 'u32[144,128]{1,0:T(1,128)}', space=vmem, size = 0x12000, scoped, tag = 'internal scratch']
  %s0 = inlined_call_operand.vmem [shape: f32[8,1024], index: 0, kind: input, shape index: {}]
  %s1 = inlined_call_operand.vmem [shape: bf16[1024,32], index: 1, kind: input, shape index: {}]
  %s2 = inlined_call_operand.vmem [shape: f32[1,32], index: 2, kind: input, shape index: {}]
  %s3 = inlined_call_operand.vmem [shape: f32[32,128], index: 3, kind: input, shape index: {}]
  %s4 = inlined_call_operand.vmem [shape: f32[1,128], index: 4, kind: input, shape index: {}]
  %s5 = inlined_call_operand.vmem [shape: f32[8,8], index: 5, kind: input, shape index: {}]
  %s6 = inlined_call_operand.vmem [shape: f32[8,32], index: 6, kind: input, shape index: {}]
  %s7 = inlined_call_operand.vmem [shape: f32[1,32], index: 7, kind: input, shape index: {}]
  %s8 = inlined_call_operand.vmem [shape: bf16[32,1024], index: 8, kind: input, shape index: {}]
  %s9 = inlined_call_operand.vmem [shape: f32[1,1024], index: 9, kind: input, shape index: {}]
  %s10 = inlined_call_operand.hbm [shape: f32[8,1024], index: 10, kind: output, shape index: {0}]
  %s11 = inlined_call_operand.hbm [shape: f32[8,128], index: 11, kind: output, shape index: {1}]
  %12 = xla_tuple %s10, %s11
  %s13 = sld [smem:[#allocation0]]
  $region58: #{tpu_custom_call.1} parent=0
    _
  %s15 = ssub.s32 1, %s13
  %s16 = scalar_select 0, %s15, %s13
  $region1: #{tpu_custom_call.1} parent=0
    #allocation2 [shape = 'u8[32768]{0}', space=vmem, size = 0x8000, scoped, tag = 'output window, operand 0, single buffered']
    #allocation3 [shape = 's32[1]{0}', space=sflag, size = 0x4, scoped, tag = 'scoped memory for tpu_custom_call.1']
    #allocation4 [shape = 'u8[4096]{0}', space=vmem, size = 0x1000, scoped, tag = 'output window, operand 1, single buffered']
    #allocation5 [shape = 's32[1]{0}', space=sflag, size = 0x4, scoped, tag = 'scoped memory for tpu_custom_call.1']
    %17 = vsyncpa [#allocation3], 0
    %18 = vsyncpa [#allocation5], 0
    // Predicated region
    $region2: #{tpu_custom_call.1} parent=1 // pred_check
      _
    $region3: #{tpu_custom_call.1} parent=1 // pred_check_branch
      %20 = sbr.rel (0) target = $region5
    $region4: #{tpu_custom_call.1} parent=1 // pred_region
      _
    $region5: #{tpu_custom_call.1} parent=1 // pred_fallthru
      _
    // Predicated region
    $region6: #{tpu_custom_call.1} parent=1 // pred_check
      _
    $region7: #{tpu_custom_call.1} parent=1 // pred_check_branch
      %22 = sbr.rel (0) target = $region9
    $region8: #{tpu_custom_call.1} parent=1 // pred_region
      _
    $region9: #{tpu_custom_call.1} parent=1 // pred_fallthru
      _
    // Predicated region
    $region10: #{tpu_custom_call.1} parent=1 // pred_check
      _
    $region11: #{tpu_custom_call.1} parent=1 // pred_check_branch
      %24 = sbr.rel (0) target = $region13
    $region12: #{tpu_custom_call.1} parent=1 // pred_region
      _
    $region13: #{tpu_custom_call.1} parent=1 // pred_fallthru
      _
    // Predicated region
    $region14: #{tpu_custom_call.1} parent=1 // pred_check
      _
    $region15: #{tpu_custom_call.1} parent=1 // pred_check_branch
      %26 = sbr.rel (0) target = $region17
    $region16: #{tpu_custom_call.1} parent=1 // pred_region
      _
    $region17: #{tpu_custom_call.1} parent=1 // pred_fallthru
      _
    // Predicated region
    $region18: #{tpu_custom_call.1} parent=1 // pred_check
      _
    $region19: #{tpu_custom_call.1} parent=1 // pred_check_branch
      %28 = sbr.rel (0) target = $region21
    $region20: #{tpu_custom_call.1} parent=1 // pred_region
      _
    $region21: #{tpu_custom_call.1} parent=1 // pred_fallthru
      _
    // Predicated region
    $region22: #{tpu_custom_call.1} parent=1 // pred_check
      _
    $region23: #{tpu_custom_call.1} parent=1 // pred_check_branch
      %30 = sbr.rel (0) target = $region25
    $region24: #{tpu_custom_call.1} parent=1 // pred_region
      _
    $region25: #{tpu_custom_call.1} parent=1 // pred_fallthru
      _
    // Predicated region
    $region26: #{tpu_custom_call.1} parent=1 // pred_check
      _
    $region27: #{tpu_custom_call.1} parent=1 // pred_check_branch
      %32 = sbr.rel (0) target = $region29
    $region28: #{tpu_custom_call.1} parent=1 // pred_region
      _
    $region29: #{tpu_custom_call.1} parent=1 // pred_fallthru
      _
    // Predicated region
    $region30: #{tpu_custom_call.1} parent=1 // pred_check
      _
    $region31: #{tpu_custom_call.1} parent=1 // pred_check_branch
      %34 = sbr.rel (0) target = $region33
    $region32: #{tpu_custom_call.1} parent=1 // pred_region
      _
    $region33: #{tpu_custom_call.1} parent=1 // pred_fallthru
      _
    // Predicated region
    $region34: #{tpu_custom_call.1} parent=1 // pred_check
      _
    $region35: #{tpu_custom_call.1} parent=1 // pred_check_branch
      %36 = sbr.rel (0) target = $region37
    $region36: #{tpu_custom_call.1} parent=1 // pred_region
      _
    $region37: #{tpu_custom_call.1} parent=1 // pred_fallthru
      _
    // Predicated region
    $region38: #{tpu_custom_call.1} parent=1 // pred_check
      _
    $region39: #{tpu_custom_call.1} parent=1 // pred_check_branch
      %38 = sbr.rel (0) target = $region41
    $region40: #{tpu_custom_call.1} parent=1 // pred_region
      _
    $region41: #{tpu_custom_call.1} parent=1 // pred_fallthru
      _
    %v40 = vld [vmem:[%s0] sm:$0xff]
    %v41 = vld [vmem:[%s0 + $0x8] sm:$0xff]
    %v42 = vld [vmem:[%s0 + $0x10] sm:$0xff]
    %v43 = vld [vmem:[%s0 + $0x18] sm:$0xff]
    %v44 = vld [vmem:[%s0 + $0x20] sm:$0xff]
    %v45 = vld [vmem:[%s0 + $0x28] sm:$0xff]
    %v46 = vld [vmem:[%s0 + $0x30] sm:$0xff]
    %v47 = vld [vmem:[%s0 + $0x38] sm:$0xff]
    %v48 = vpack.c.bf16 %v40, %v40
    %v49 = vpack.c.bf16 %v41, %v41
    %v50 = vpack.c.bf16 %v42, %v42
    %v51 = vpack.c.bf16 %v43, %v43
    %v52 = vpack.c.bf16 %v44, %v44
    %v53 = vpack.c.bf16 %v45, %v45
    %v54 = vpack.c.bf16 %v46, %v46
    %v55 = vpack.c.bf16 %v47, %v47
    %v56 = vld [vmem:[%s1] sm:$0xf]
    %v57 = vld [vmem:[%s1 + $0x4] sm:$0xf]
    %v58 = vld [vmem:[%s1 + $0x8] sm:$0xf]
    %v59 = vld [vmem:[%s1 + $0xc] sm:$0xf]
    %v60 = vld [vmem:[%s1 + $0x10] sm:$0xf]
    %v61 = vld [vmem:[%s1 + $0x14] sm:$0xf]
    %v62 = vld [vmem:[%s1 + $0x18] sm:$0xf]
    %v63 = vld [vmem:[%s1 + $0x1c] sm:$0xf]
    %v64 = vld [vmem:[%s1 + $0x20] sm:$0xf]
    %v65 = vld [vmem:[%s1 + $0x24] sm:$0xf]
    %v66 = vld [vmem:[%s1 + $0x28] sm:$0xf]
    %v67 = vld [vmem:[%s1 + $0x2c] sm:$0xf]
    %v68 = vld [vmem:[%s1 + $0x30] sm:$0xf]
    %v69 = vld [vmem:[%s1 + $0x34] sm:$0xf]
    %v70 = vld [vmem:[%s1 + $0x38] sm:$0xf]
    %v71 = vld [vmem:[%s1 + $0x3c] sm:$0xf]
    %v72 = vld [vmem:[%s1 + $0x40] sm:$0xf]
    %v73 = vld [vmem:[%s1 + $0x44] sm:$0xf]
    %v74 = vld [vmem:[%s1 + $0x48] sm:$0xf]
    %v75 = vld [vmem:[%s1 + $0x4c] sm:$0xf]
    %v76 = vld [vmem:[%s1 + $0x50] sm:$0xf]
    %v77 = vld [vmem:[%s1 + $0x54] sm:$0xf]
    %v78 = vld [vmem:[%s1 + $0x58] sm:$0xf]
    %v79 = vld [vmem:[%s1 + $0x5c] sm:$0xf]
    %v80 = vld [vmem:[%s1 + $0x60] sm:$0xf]
    %v81 = vld [vmem:[%s1 + $0x64] sm:$0xf]
    %v82 = vld [vmem:[%s1 + $0x68] sm:$0xf]
    %v83 = vld [vmem:[%s1 + $0x6c] sm:$0xf]
    %v84 = vld [vmem:[%s1 + $0x70] sm:$0xf]
    %v85 = vld [vmem:[%s1 + $0x74] sm:$0xf]
    %v86 = vld [vmem:[%s1 + $0x78] sm:$0xf]
    %v87 = vld [vmem:[%s1 + $0x7c] sm:$0xf]
    %v88 = vld [vmem:[%s1 + $0x80] sm:$0xf]
    %v89 = vld [vmem:[%s1 + $0x84] sm:$0xf]
    %v90 = vld [vmem:[%s1 + $0x88] sm:$0xf]
    %v91 = vld [vmem:[%s1 + $0x8c] sm:$0xf]
    %v92 = vld [vmem:[%s1 + $0x90] sm:$0xf]
    %v93 = vld [vmem:[%s1 + $0x94] sm:$0xf]
    %v94 = vld [vmem:[%s1 + $0x98] sm:$0xf]
    %v95 = vld [vmem:[%s1 + $0x9c] sm:$0xf]
    %v96 = vld [vmem:[%s1 + $0xa0] sm:$0xf]
    %v97 = vld [vmem:[%s1 + $0xa4] sm:$0xf]
    %v98 = vld [vmem:[%s1 + $0xa8] sm:$0xf]
    %v99 = vld [vmem:[%s1 + $0xac] sm:$0xf]
    %v100 = vld [vmem:[%s1 + $0xb0] sm:$0xf]
    %v101 = vld [vmem:[%s1 + $0xb4] sm:$0xf]
    %v102 = vld [vmem:[%s1 + $0xb8] sm:$0xf]
    %v103 = vld [vmem:[%s1 + $0xbc] sm:$0xf]
    %v104 = vld [vmem:[%s1 + $0xc0] sm:$0xf]
    %v105 = vld [vmem:[%s1 + $0xc4] sm:$0xf]
    %v106 = vld [vmem:[%s1 + $0xc8] sm:$0xf]
    %v107 = vld [vmem:[%s1 + $0xcc] sm:$0xf]
    %v108 = vld [vmem:[%s1 + $0xd0] sm:$0xf]
    %v109 = vld [vmem:[%s1 + $0xd4] sm:$0xf]
    %v110 = vld [vmem:[%s1 + $0xd8] sm:$0xf]
    %v111 = vld [vmem:[%s1 + $0xdc] sm:$0xf]
    %v112 = vld [vmem:[%s1 + $0xe0] sm:$0xf]
    %v113 = vld [vmem:[%s1 + $0xe4] sm:$0xf]
    %v114 = vld [vmem:[%s1 + $0xe8] sm:$0xf]
    %v115 = vld [vmem:[%s1 + $0xec] sm:$0xf]
    %v116 = vld [vmem:[%s1 + $0xf0] sm:$0xf]
    %v117 = vld [vmem:[%s1 + $0xf4] sm:$0xf]
    %v118 = vld [vmem:[%s1 + $0xf8] sm:$0xf]
    %v119 = vld [vmem:[%s1 + $0xfc] sm:$0xf]
    %v120 = vld [vmem:[%s1 + $0x100] sm:$0xf]
    %v121 = vld [vmem:[%s1 + $0x104] sm:$0xf]
    %v122 = vld [vmem:[%s1 + $0x108] sm:$0xf]
    %v123 = vld [vmem:[%s1 + $0x10c] sm:$0xf]
    %v124 = vld [vmem:[%s1 + $0x110] sm:$0xf]
    %v125 = vld [vmem:[%s1 + $0x114] sm:$0xf]
    %v126 = vld [vmem:[%s1 + $0x118] sm:$0xf]
    %v127 = vld [vmem:[%s1 + $0x11c] sm:$0xf]
    %v128 = vld [vmem:[%s1 + $0x120] sm:$0xf]
    %v129 = vld [vmem:[%s1 + $0x124] sm:$0xf]
    %v130 = vld [vmem:[%s1 + $0x128] sm:$0xf]
    %v131 = vld [vmem:[%s1 + $0x12c] sm:$0xf]
    %v132 = vld [vmem:[%s1 + $0x130] sm:$0xf]
    %v133 = vld [vmem:[%s1 + $0x134] sm:$0xf]
    %v134 = vld [vmem:[%s1 + $0x138] sm:$0xf]
    %v135 = vld [vmem:[%s1 + $0x13c] sm:$0xf]
    %v136 = vld [vmem:[%s1 + $0x140] sm:$0xf]
    %v137 = vld [vmem:[%s1 + $0x144] sm:$0xf]
    %v138 = vld [vmem:[%s1 + $0x148] sm:$0xf]
    %v139 = vld [vmem:[%s1 + $0x14c] sm:$0xf]
    %v140 = vld [vmem:[%s1 + $0x150] sm:$0xf]
    %v141 = vld [vmem:[%s1 + $0x154] sm:$0xf]
    %v142 = vld [vmem:[%s1 + $0x158] sm:$0xf]
    %v143 = vld [vmem:[%s1 + $0x15c] sm:$0xf]
    %v144 = vld [vmem:[%s1 + $0x160] sm:$0xf]
    %v145 = vld [vmem:[%s1 + $0x164] sm:$0xf]
    %v146 = vld [vmem:[%s1 + $0x168] sm:$0xf]
    %v147 = vld [vmem:[%s1 + $0x16c] sm:$0xf]
    %v148 = vld [vmem:[%s1 + $0x170] sm:$0xf]
    %v149 = vld [vmem:[%s1 + $0x174] sm:$0xf]
    %v150 = vld [vmem:[%s1 + $0x178] sm:$0xf]
    %v151 = vld [vmem:[%s1 + $0x17c] sm:$0xf]
    %v152 = vld [vmem:[%s1 + $0x180] sm:$0xf]
    %v153 = vld [vmem:[%s1 + $0x184] sm:$0xf]
    %v154 = vld [vmem:[%s1 + $0x188] sm:$0xf]
    %v155 = vld [vmem:[%s1 + $0x18c] sm:$0xf]
    %v156 = vld [vmem:[%s1 + $0x190] sm:$0xf]
    %v157 = vld [vmem:[%s1 + $0x194] sm:$0xf]
    %v158 = vld [vmem:[%s1 + $0x198] sm:$0xf]
    %v159 = vld [vmem:[%s1 + $0x19c] sm:$0xf]
    %v160 = vld [vmem:[%s1 + $0x1a0] sm:$0xf]
    %v161 = vld [vmem:[%s1 + $0x1a4] sm:$0xf]
    %v162 = vld [vmem:[%s1 + $0x1a8] sm:$0xf]
    %v163 = vld [vmem:[%s1 + $0x1ac] sm:$0xf]
    %v164 = vld [vmem:[%s1 + $0x1b0] sm:$0xf]
    %v165 = vld [vmem:[%s1 + $0x1b4] sm:$0xf]
    %v166 = vld [vmem:[%s1 + $0x1b8] sm:$0xf]
    %v167 = vld [vmem:[%s1 + $0x1bc] sm:$0xf]
    %v168 = vld [vmem:[%s1 + $0x1c0] sm:$0xf]
    %v169 = vld [vmem:[%s1 + $0x1c4] sm:$0xf]
    %v170 = vld [vmem:[%s1 + $0x1c8] sm:$0xf]
    %v171 = vld [vmem:[%s1 + $0x1cc] sm:$0xf]
    %v172 = vld [vmem:[%s1 + $0x1d0] sm:$0xf]
    %v173 = vld [vmem:[%s1 + $0x1d4] sm:$0xf]
    %v174 = vld [vmem:[%s1 + $0x1d8] sm:$0xf]
    %v175 = vld [vmem:[%s1 + $0x1dc] sm:$0xf]
    %v176 = vld [vmem:[%s1 + $0x1e0] sm:$0xf]
    %v177 = vld [vmem:[%s1 + $0x1e4] sm:$0xf]
    %v178 = vld [vmem:[%s1 + $0x1e8] sm:$0xf]
    %v179 = vld [vmem:[%s1 + $0x1ec] sm:$0xf]
    %v180 = vld [vmem:[%s1 + $0x1f0] sm:$0xf]
    %v181 = vld [vmem:[%s1 + $0x1f4] sm:$0xf]
    %v182 = vld [vmem:[%s1 + $0x1f8] sm:$0xf]
    %v183 = vld [vmem:[%s1 + $0x1fc] sm:$0xf]
    %v184 = vld [vmem:[%s2] sm:$0x1]
    %v186 = vlaneseq
    %v187 = vshrl.u32 %v186, 7
    %v188 = vsub.s32 0, %v187
    %v189 = vrot.slane %v184, %v188
    %v319 = vunpack.c.l.b16 %v56
    %v320 = vunpack.c.l.b16 %v57
    %v321 = vunpack.c.l.b16 %v58
    %v322 = vunpack.c.l.b16 %v59
    %v323 = vunpack.c.l.b16 %v60
    %v324 = vunpack.c.l.b16 %v61
    %v325 = vunpack.c.l.b16 %v62
    %v326 = vunpack.c.l.b16 %v63
    %v327 = vunpack.c.l.b16 %v64
    %v328 = vunpack.c.l.b16 %v65
    %v329 = vunpack.c.l.b16 %v66
    %v330 = vunpack.c.l.b16 %v67
    %v331 = vunpack.c.l.b16 %v68
    %v332 = vunpack.c.l.b16 %v69
    %v333 = vunpack.c.l.b16 %v70
    %v334 = vunpack.c.l.b16 %v71
    %v335 = vunpack.c.l.b16 %v72
    %v336 = vunpack.c.l.b16 %v73
    %v337 = vunpack.c.l.b16 %v74
    %v338 = vunpack.c.l.b16 %v75
    %v339 = vunpack.c.l.b16 %v76
    %v340 = vunpack.c.l.b16 %v77
    %v341 = vunpack.c.l.b16 %v78
    %v342 = vunpack.c.l.b16 %v79
    %v343 = vunpack.c.l.b16 %v80
    %v344 = vunpack.c.l.b16 %v81
    %v345 = vunpack.c.l.b16 %v82
    %v346 = vunpack.c.l.b16 %v83
    %v347 = vunpack.c.l.b16 %v84
    %v348 = vunpack.c.l.b16 %v85
    %v349 = vunpack.c.l.b16 %v86
    %v350 = vunpack.c.l.b16 %v87
    %v351 = vunpack.c.l.b16 %v88
    %v352 = vunpack.c.l.b16 %v89
    %v353 = vunpack.c.l.b16 %v90
    %v354 = vunpack.c.l.b16 %v91
    %v355 = vunpack.c.l.b16 %v92
    %v356 = vunpack.c.l.b16 %v93
    %v357 = vunpack.c.l.b16 %v94
    %v358 = vunpack.c.l.b16 %v95
    %v359 = vunpack.c.l.b16 %v96
    %v360 = vunpack.c.l.b16 %v97
    %v361 = vunpack.c.l.b16 %v98
    %v362 = vunpack.c.l.b16 %v99
    %v363 = vunpack.c.l.b16 %v100
    %v364 = vunpack.c.l.b16 %v101
    %v365 = vunpack.c.l.b16 %v102
    %v366 = vunpack.c.l.b16 %v103
    %v367 = vunpack.c.l.b16 %v104
    %v368 = vunpack.c.l.b16 %v105
    %v369 = vunpack.c.l.b16 %v106
    %v370 = vunpack.c.l.b16 %v107
    %v371 = vunpack.c.l.b16 %v108
    %v372 = vunpack.c.l.b16 %v109
    %v373 = vunpack.c.l.b16 %v110
    %v374 = vunpack.c.l.b16 %v111
    %v375 = vunpack.c.l.b16 %v112
    %v376 = vunpack.c.l.b16 %v113
    %v377 = vunpack.c.l.b16 %v114
    %v378 = vunpack.c.l.b16 %v115
    %v379 = vunpack.c.l.b16 %v116
    %v380 = vunpack.c.l.b16 %v117
    %v381 = vunpack.c.l.b16 %v118
    %v382 = vunpack.c.l.b16 %v119
    %v383 = vunpack.c.l.b16 %v120
    %v384 = vunpack.c.l.b16 %v121
    %v385 = vunpack.c.l.b16 %v122
    %v386 = vunpack.c.l.b16 %v123
    %v387 = vunpack.c.l.b16 %v124
    %v388 = vunpack.c.l.b16 %v125
    %v389 = vunpack.c.l.b16 %v126
    %v390 = vunpack.c.l.b16 %v127
    %v391 = vunpack.c.l.b16 %v128
    %v392 = vunpack.c.l.b16 %v129
    %v393 = vunpack.c.l.b16 %v130
    %v394 = vunpack.c.l.b16 %v131
    %v395 = vunpack.c.l.b16 %v132
    %v396 = vunpack.c.l.b16 %v133
    %v397 = vunpack.c.l.b16 %v134
    %v398 = vunpack.c.l.b16 %v135
    %v399 = vunpack.c.l.b16 %v136
    %v400 = vunpack.c.l.b16 %v137
    %v401 = vunpack.c.l.b16 %v138
    %v402 = vunpack.c.l.b16 %v139
    %v403 = vunpack.c.l.b16 %v140
    %v404 = vunpack.c.l.b16 %v141
    %v405 = vunpack.c.l.b16 %v142
    %v406 = vunpack.c.l.b16 %v143
    %v407 = vunpack.c.l.b16 %v144
    %v408 = vunpack.c.l.b16 %v145
    %v409 = vunpack.c.l.b16 %v146
    %v410 = vunpack.c.l.b16 %v147
    %v411 = vunpack.c.l.b16 %v148
    %v412 = vunpack.c.l.b16 %v149
    %v413 = vunpack.c.l.b16 %v150
    %v414 = vunpack.c.l.b16 %v151
    %v415 = vunpack.c.l.b16 %v152
    %v416 = vunpack.c.l.b16 %v153
    %v417 = vunpack.c.l.b16 %v154
    %v418 = vunpack.c.l.b16 %v155
    %v419 = vunpack.c.l.b16 %v156
    %v420 = vunpack.c.l.b16 %v157
    %v421 = vunpack.c.l.b16 %v158
    %v422 = vunpack.c.l.b16 %v159
    %v423 = vunpack.c.l.b16 %v160
    %v424 = vunpack.c.l.b16 %v161
    %v425 = vunpack.c.l.b16 %v162
    %v426 = vunpack.c.l.b16 %v163
    %v427 = vunpack.c.l.b16 %v164
    %v428 = vunpack.c.l.b16 %v165
    %v429 = vunpack.c.l.b16 %v166
    %v430 = vunpack.c.l.b16 %v167
    %v431 = vunpack.c.l.b16 %v168
    %v432 = vunpack.c.l.b16 %v169
    %v433 = vunpack.c.l.b16 %v170
    %v434 = vunpack.c.l.b16 %v171
    %v435 = vunpack.c.l.b16 %v172
    %v436 = vunpack.c.l.b16 %v173
    %v437 = vunpack.c.l.b16 %v174
    %v438 = vunpack.c.l.b16 %v175
    %v439 = vunpack.c.l.b16 %v176
    %v440 = vunpack.c.l.b16 %v177
    %v441 = vunpack.c.l.b16 %v178
    %v442 = vunpack.c.l.b16 %v179
    %v443 = vunpack.c.l.b16 %v180
    %v444 = vunpack.c.l.b16 %v181
    %v445 = vunpack.c.l.b16 %v182
    %v446 = vunpack.c.l.b16 %v183
    %v447 = vpack.c.b16 %v320, %v319
    %v448 = vpack.c.b16 %v322, %v321
    %v449 = vpack.c.b16 %v324, %v323
    %v450 = vpack.c.b16 %v326, %v325
    %v451 = vpack.c.b16 %v328, %v327
    %v452 = vpack.c.b16 %v330, %v329
    %v453 = vpack.c.b16 %v332, %v331
    %v454 = vpack.c.b16 %v334, %v333
    %v455 = vpack.c.b16 %v336, %v335
    %v456 = vpack.c.b16 %v338, %v337
    %v457 = vpack.c.b16 %v340, %v339
    %v458 = vpack.c.b16 %v342, %v341
    %v459 = vpack.c.b16 %v344, %v343
    %v460 = vpack.c.b16 %v346, %v345
    %v461 = vpack.c.b16 %v348, %v347
    %v462 = vpack.c.b16 %v350, %v349
    %v463 = vpack.c.b16 %v352, %v351
    %v464 = vpack.c.b16 %v354, %v353
    %v465 = vpack.c.b16 %v356, %v355
    %v466 = vpack.c.b16 %v358, %v357
    %v467 = vpack.c.b16 %v360, %v359
    %v468 = vpack.c.b16 %v362, %v361
    %v469 = vpack.c.b16 %v364, %v363
    %v470 = vpack.c.b16 %v366, %v365
    %v471 = vpack.c.b16 %v368, %v367
    %v472 = vpack.c.b16 %v370, %v369
    %v473 = vpack.c.b16 %v372, %v371
    %v474 = vpack.c.b16 %v374, %v373
    %v475 = vpack.c.b16 %v376, %v375
    %v476 = vpack.c.b16 %v378, %v377
    %v477 = vpack.c.b16 %v380, %v379
    %v478 = vpack.c.b16 %v382, %v381
    %v479 = vpack.c.b16 %v384, %v383
    %v480 = vpack.c.b16 %v386, %v385
    %v481 = vpack.c.b16 %v388, %v387
    %v482 = vpack.c.b16 %v390, %v389
    %v483 = vpack.c.b16 %v392, %v391
    %v484 = vpack.c.b16 %v394, %v393
    %v485 = vpack.c.b16 %v396, %v395
    %v486 = vpack.c.b16 %v398, %v397
    %v487 = vpack.c.b16 %v400, %v399
    %v488 = vpack.c.b16 %v402, %v401
    %v489 = vpack.c.b16 %v404, %v403
    %v490 = vpack.c.b16 %v406, %v405
    %v491 = vpack.c.b16 %v408, %v407
    %v492 = vpack.c.b16 %v410, %v409
    %v493 = vpack.c.b16 %v412, %v411
    %v494 = vpack.c.b16 %v414, %v413
    %v495 = vpack.c.b16 %v416, %v415
    %v496 = vpack.c.b16 %v418, %v417
    %v497 = vpack.c.b16 %v420, %v419
    %v498 = vpack.c.b16 %v422, %v421
    %v499 = vpack.c.b16 %v424, %v423
    %v500 = vpack.c.b16 %v426, %v425
    %v501 = vpack.c.b16 %v428, %v427
    %v502 = vpack.c.b16 %v430, %v429
    %v503 = vpack.c.b16 %v432, %v431
    %v504 = vpack.c.b16 %v434, %v433
    %v505 = vpack.c.b16 %v436, %v435
    %v506 = vpack.c.b16 %v438, %v437
    %v507 = vpack.c.b16 %v440, %v439
    %v508 = vpack.c.b16 %v442, %v441
    %v509 = vpack.c.b16 %v444, %v443
    %v510 = vpack.c.b16 %v446, %v445
    %575 = vmatprep.subr.bf16.mxu0 0
    %576 = vmatpush1.bf16.msra.mxu0 %v447
    %577 = vmatprep.subr.bf16.mxu0 0
    %578 = vmatpush1.bf16.msra.mxu0 %v448
    %579 = vmatprep.subr.bf16.mxu0 0
    %580 = vmatpush1.bf16.msra.mxu0 %v449
    %581 = vmatprep.subr.bf16.mxu0 0
    %582 = vmatpush1.bf16.msra.mxu0 %v450
    %583 = vmatprep.subr.bf16.mxu0 0
    %584 = vmatpush1.bf16.msra.mxu0 %v451
    %585 = vmatprep.subr.bf16.mxu0 0
    %586 = vmatpush1.bf16.msra.mxu0 %v452
    %587 = vmatprep.subr.bf16.mxu0 0
    %588 = vmatpush1.bf16.msra.mxu0 %v453
    %589 = vmatprep.subr.bf16.mxu0 0
    %590 = vmatpush1.bf16.msra.mxu0 %v454
    %591 = vmatprep.subr.bf16.mxu0 0
    %592 = vmatpush1.bf16.msra.mxu0 %v455
    %593 = vmatprep.subr.bf16.mxu0 0
    %594 = vmatpush1.bf16.msra.mxu0 %v456
    %595 = vmatprep.subr.bf16.mxu0 0
    %596 = vmatpush1.bf16.msra.mxu0 %v457
    %597 = vmatprep.subr.bf16.mxu0 0
    %598 = vmatpush1.bf16.msra.mxu0 %v458
    %599 = vmatprep.subr.bf16.mxu0 0
    %600 = vmatpush1.bf16.msra.mxu0 %v459
    %601 = vmatprep.subr.bf16.mxu0 0
    %602 = vmatpush1.bf16.msra.mxu0 %v460
    %603 = vmatprep.subr.bf16.mxu0 0
    %604 = vmatpush1.bf16.msra.mxu0 %v461
    %605 = vmatprep.subr.bf16.mxu0 0
    %606 = vmatpush1.bf16.msra.mxu0 %v462
    %607 = vmatprep.mubr.bf16.mxu0 %v49
    %608 = vmatmul.mubr.bf16.gmra.mrb[0].mxu0 %v48
    %v609 = vpop.f32.mrb[0].mxu0
    %v610 = vadd.f32 %v189, %v609
    %v611 = vpop.f32.mrb[0].mxu0
    %v612 = vpop.f32.mrb[0].mxu0
    %v613 = vpop.f32.mrb[0].mxu0
    %614 = vdwg.mxu0
    %615 = vmatprep.subr.bf16.mxu0 0
    %616 = vmatpush1.bf16.msra.mxu0 %v463
    %617 = vmatprep.subr.bf16.mxu0 0
    %618 = vmatpush1.bf16.msra.mxu0 %v464
    %619 = vmatprep.subr.bf16.mxu0 0
    %620 = vmatpush1.bf16.msra.mxu0 %v465
    %621 = vmatprep.subr.bf16.mxu0 0
    %622 = vmatpush1.bf16.msra.mxu0 %v466
    %623 = vmatprep.subr.bf16.mxu0 0
    %624 = vmatpush1.bf16.msra.mxu0 %v467
    %625 = vmatprep.subr.bf16.mxu0 0
    %626 = vmatpush1.bf16.msra.mxu0 %v468
    %627 = vmatprep.subr.bf16.mxu0 0
    %628 = vmatpush1.bf16.msra.mxu0 %v469
    %629 = vmatprep.subr.bf16.mxu0 0
    %630 = vmatpush1.bf16.msra.mxu0 %v470
    %631 = vmatprep.subr.bf16.mxu0 0
    %632 = vmatpush1.bf16.msra.mxu0 %v471
    %633 = vmatprep.subr.bf16.mxu0 0
    %634 = vmatpush1.bf16.msra.mxu0 %v472
    %635 = vmatprep.subr.bf16.mxu0 0
    %636 = vmatpush1.bf16.msra.mxu0 %v473
    %637 = vmatprep.subr.bf16.mxu0 0
    %638 = vmatpush1.bf16.msra.mxu0 %v474
    %639 = vmatprep.subr.bf16.mxu0 0
    %640 = vmatpush1.bf16.msra.mxu0 %v475
    %641 = vmatprep.subr.bf16.mxu0 0
    %642 = vmatpush1.bf16.msra.mxu0 %v476
    %643 = vmatprep.subr.bf16.mxu0 0
    %644 = vmatpush1.bf16.msra.mxu0 %v477
    %645 = vmatprep.subr.bf16.mxu0 0
    %646 = vmatpush1.bf16.msra.mxu0 %v478
    %647 = vmatprep.mubr.bf16.mxu0 %v51
    %648 = vmatmul.mubr.bf16.gmra.mrb[0].mxu0 %v50
    %v649 = vpop.f32.mrb[0].mxu0
    %v650 = vadd.f32 %v610, %v649
    %v651 = vpop.f32.mrb[0].mxu0
    %v652 = vpop.f32.mrb[0].mxu0
    %v653 = vpop.f32.mrb[0].mxu0
    %654 = vdwg.mxu0
    %655 = vmatprep.subr.bf16.mxu0 0
    %656 = vmatpush1.bf16.msra.mxu0 %v479
    %657 = vmatprep.subr.bf16.mxu0 0
    %658 = vmatpush1.bf16.msra.mxu0 %v480
    %659 = vmatprep.subr.bf16.mxu0 0
    %660 = vmatpush1.bf16.msra.mxu0 %v481
    %661 = vmatprep.subr.bf16.mxu0 0
    %662 = vmatpush1.bf16.msra.mxu0 %v482
    %663 = vmatprep.subr.bf16.mxu0 0
    %664 = vmatpush1.bf16.msra.mxu0 %v483
    %665 = vmatprep.subr.bf16.mxu0 0
    %666 = vmatpush1.bf16.msra.mxu0 %v484
    %667 = vmatprep.subr.bf16.mxu0 0
    %668 = vmatpush1.bf16.msra.mxu0 %v485
    %669 = vmatprep.subr.bf16.mxu0 0
    %670 = vmatpush1.bf16.msra.mxu0 %v486
    %671 = vmatprep.subr.bf16.mxu0 0
    %672 = vmatpush1.bf16.msra.mxu0 %v487
    %673 = vmatprep.subr.bf16.mxu0 0
    %674 = vmatpush1.bf16.msra.mxu0 %v488
    %675 = vmatprep.subr.bf16.mxu0 0
    %676 = vmatpush1.bf16.msra.mxu0 %v489
    %677 = vmatprep.subr.bf16.mxu0 0
    %678 = vmatpush1.bf16.msra.mxu0 %v490
    %679 = vmatprep.subr.bf16.mxu0 0
    %680 = vmatpush1.bf16.msra.mxu0 %v491
    %681 = vmatprep.subr.bf16.mxu0 0
    %682 = vmatpush1.bf16.msra.mxu0 %v492
    %683 = vmatprep.subr.bf16.mxu0 0
    %684 = vmatpush1.bf16.msra.mxu0 %v493
    %685 = vmatprep.subr.bf16.mxu0 0
    %686 = vmatpush1.bf16.msra.mxu0 %v494
    %687 = vmatprep.mubr.bf16.mxu0 %v53
    %688 = vmatmul.mubr.bf16.gmra.mrb[0].mxu0 %v52
    %v689 = vpop.f32.mrb[0].mxu0
    %v690 = vadd.f32 %v650, %v689
    %v691 = vpop.f32.mrb[0].mxu0
    %v692 = vpop.f32.mrb[0].mxu0
    %v693 = vpop.f32.mrb[0].mxu0
    %694 = vdwg.mxu0
    %695 = vmatprep.subr.bf16.mxu0 0
    %696 = vmatpush1.bf16.msra.mxu0 %v495
    %697 = vmatprep.subr.bf16.mxu0 0
    %698 = vmatpush1.bf16.msra.mxu0 %v496
    %699 = vmatprep.subr.bf16.mxu0 0
    %700 = vmatpush1.bf16.msra.mxu0 %v497
    %701 = vmatprep.subr.bf16.mxu0 0
    %702 = vmatpush1.bf16.msra.mxu0 %v498
    %703 = vmatprep.subr.bf16.mxu0 0
    %704 = vmatpush1.bf16.msra.mxu0 %v499
    %705 = vmatprep.subr.bf16.mxu0 0
    %706 = vmatpush1.bf16.msra.mxu0 %v500
    %707 = vmatprep.subr.bf16.mxu0 0
    %708 = vmatpush1.bf16.msra.mxu0 %v501
    %709 = vmatprep.subr.bf16.mxu0 0
    %710 = vmatpush1.bf16.msra.mxu0 %v502
    %711 = vmatprep.subr.bf16.mxu0 0
    %712 = vmatpush1.bf16.msra.mxu0 %v503
    %713 = vmatprep.subr.bf16.mxu0 0
    %714 = vmatpush1.bf16.msra.mxu0 %v504
    %715 = vmatprep.subr.bf16.mxu0 0
    %716 = vmatpush1.bf16.msra.mxu0 %v505
    %717 = vmatprep.subr.bf16.mxu0 0
    %718 = vmatpush1.bf16.msra.mxu0 %v506
    %719 = vmatprep.subr.bf16.mxu0 0
    %720 = vmatpush1.bf16.msra.mxu0 %v507
    %721 = vmatprep.subr.bf16.mxu0 0
    %722 = vmatpush1.bf16.msra.mxu0 %v508
    %723 = vmatprep.subr.bf16.mxu0 0
    %724 = vmatpush1.bf16.msra.mxu0 %v509
    %725 = vmatprep.subr.bf16.mxu0 0
    %726 = vmatpush1.bf16.msra.mxu0 %v510
    %727 = vmatprep.mubr.bf16.mxu0 %v55
    %728 = vmatmul.mubr.bf16.gmra.mrb[0].mxu0 %v54
    %v729 = vpop.f32.mrb[0].mxu0
    %v730 = vadd.f32 %v690, %v729
    %v731 = vpop.f32.mrb[0].mxu0
    %v732 = vpop.f32.mrb[0].mxu0
    %v733 = vpop.f32.mrb[0].mxu0
    %734 = vdwg.mxu0
    %v735 = vmax.f32 %v730, 0.0
    %v736 = vld [vmem:[%s3] sm:$0xff]
    %v737 = vld [vmem:[%s3 + $0x8] sm:$0xff]
    %v738 = vld [vmem:[%s3 + $0x10] sm:$0xff]
    %v739 = vld [vmem:[%s3 + $0x18] sm:$0xff]
    %v740 = vld [vmem:[%s4] sm:$0x1]
    %v742 = vlaneseq
    %v743 = vshrl.u32 %v742, 7
    %v744 = vsub.s32 0, %v743
    %v745 = vrot.slane %v740, %v744
    %vm747 = vcmask 261120
    %v749 = vsel %vm747, %v735, 0
    %751 = vmatprep.subr.mxu0 0.0
    %752 = vmatpush1.msra.mxu0 %v736
    %753 = vmatprep.subr.mxu0 0.0
    %754 = vmatpush1.msra.mxu0 %v737
    %755 = vmatprep.subr.mxu0 0.0
    %756 = vmatpush1.msra.mxu0 %v738
    %757 = vmatprep.subr.mxu0 0.0
    %758 = vmatpush1.msra.mxu0 %v739
    %759 = vmatprep.subr.mxu0 0.0
    %760 = vmatpush1.msra.mxu0 0.0
    %761 = vmatprep.subr.mxu0 0.0
    %762 = vmatpush1.msra.mxu0 0.0
    %763 = vmatprep.subr.mxu0 0.0
    %764 = vmatpush1.msra.mxu0 0.0
    %765 = vmatprep.subr.mxu0 0.0
    %766 = vmatpush1.msra.mxu0 0.0
    %767 = vmatprep.subr.mxu0 0.0
    %768 = vmatpush1.msra.mxu0 0.0
    %769 = vmatprep.subr.mxu0 0.0
    %770 = vmatpush1.msra.mxu0 0.0
    %771 = vmatprep.subr.mxu0 0.0
    %772 = vmatpush1.msra.mxu0 0.0
    %773 = vmatprep.subr.mxu0 0.0
    %774 = vmatpush1.msra.mxu0 0.0
    %775 = vmatprep.subr.mxu0 0.0
    %776 = vmatpush1.msra.mxu0 0.0
    %777 = vmatprep.subr.mxu0 0.0
    %778 = vmatpush1.msra.mxu0 0.0
    %779 = vmatprep.subr.mxu0 0.0
    %780 = vmatpush1.msra.mxu0 0.0
    %781 = vmatprep.subr.mxu0 0.0
    %782 = vmatpush1.msra.mxu0 0.0
    %783 = vmatprep.subr.mxu0 0.0
    %784 = vmatpush1.msra.mxu0 0.0
    %785 = vmatprep.subr.mxu0 0.0
    %786 = vmatpush1.msra.mxu0 0.0
    %787 = vmatprep.subr.mxu0 0.0
    %788 = vmatpush1.msra.mxu0 0.0
    %789 = vmatprep.subr.mxu0 0.0
    %790 = vmatpush1.msra.mxu0 0.0
    %791 = vmatprep.subr.mxu0 0.0
    %792 = vmatpush1.msra.mxu0 0.0
    %793 = vmatprep.subr.mxu0 0.0
    %794 = vmatpush1.msra.mxu0 0.0
    %795 = vmatprep.subr.mxu0 0.0
    %796 = vmatpush1.msra.mxu0 0.0
    %797 = vmatprep.subr.mxu0 0.0
    %798 = vmatpush1.msra.mxu0 0.0
    %799 = vmatprep.subr.mxu0 0.0
    %800 = vmatpush1.msra.mxu0 0.0
    %801 = vmatprep.subr.mxu0 0.0
    %802 = vmatpush1.msra.mxu0 0.0
    %803 = vmatprep.subr.mxu0 0.0
    %804 = vmatpush1.msra.mxu0 0.0
    %805 = vmatprep.subr.mxu0 0.0
    %806 = vmatpush1.msra.mxu0 0.0
    %807 = vmatprep.subr.mxu0 0.0
    %808 = vmatpush1.msra.mxu0 0.0
    %809 = vmatprep.subr.mxu0 0.0
    %810 = vmatpush1.msra.mxu0 0.0
    %811 = vmatprep.subr.mxu0 0.0
    %812 = vmatpush1.msra.mxu0 0.0
    %813 = vmatprep.subr.mxu0 0.0
    %814 = vmatpush1.msra.mxu0 0.0
    %815 = vmatprep.mubr.f32.mxu0 0.0
    %816 = vmatmul.mubr.f32.gmra.mrb[0].mxu0 %v749
    %v817 = vpop.f32.mrb[0].mxu0
    %v818 = vadd.f32 %v745, %v817
    %v819 = vpop.f32.mrb[0].mxu0
    %820 = vdwg.mxu0
    %821 = vst [vmem:[#allocation4] sm:$0xff] %v818
    %v822 = vmul.f32 %v818, 0.5
    %v823 = vmul.f32 %v822, 1.442695
    %v824 = vpow.pop %v823
    %v825 = vld [vmem:[%s5] sm:$0xff]
    %827 = vrot.lane.b32.xlu0 %v825, 8
    %v828 = vpop.permute.xlu0 %827
    %v830 = vmul.f32 %v824, %v828
    %832 = vrot.lane.b32.xlu0 %v830, 120
    %v833 = vpop.permute.xlu0 %832
    %v835 = vadd.f32 %v818, %v833
    %v836 = vld [vmem:[%s6] sm:$0xff]
    %v837 = vld [vmem:[%s7] sm:$0x1]
    %v839 = vlaneseq
    %v840 = vshrl.u32 %v839, 7
    %v841 = vsub.s32 0, %v840
    %v842 = vrot.slane %v837, %v841
    %vm844 = vcmask 64512
    %v846 = vsel %vm844, %v835, 0
    %848 = vmatprep.subr.mxu0 0.0
    %849 = vmatpush1.msra.mxu0 %v836
    %850 = vmatprep.subr.mxu0 0.0
    %851 = vmatpush1.msra.mxu0 0.0
    %852 = vmatprep.subr.mxu0 0.0
    %853 = vmatpush1.msra.mxu0 0.0
    %854 = vmatprep.subr.mxu0 0.0
    %855 = vmatpush1.msra.mxu0 0.0
    %856 = vmatprep.subr.mxu0 0.0
    %857 = vmatpush1.msra.mxu0 0.0
    %858 = vmatprep.subr.mxu0 0.0
    %859 = vmatpush1.msra.mxu0 0.0
    %860 = vmatprep.subr.mxu0 0.0
    %861 = vmatpush1.msra.mxu0 0.0
    %862 = vmatprep.subr.mxu0 0.0
    %863 = vmatpush1.msra.mxu0 0.0
    %864 = vmatprep.subr.mxu0 0.0
    %865 = vmatpush1.msra.mxu0 0.0
    %866 = vmatprep.subr.mxu0 0.0
    %867 = vmatpush1.msra.mxu0 0.0
    %868 = vmatprep.subr.mxu0 0.0
    %869 = vmatpush1.msra.mxu0 0.0
    %870 = vmatprep.subr.mxu0 0.0
    %871 = vmatpush1.msra.mxu0 0.0
    %872 = vmatprep.subr.mxu0 0.0
    %873 = vmatpush1.msra.mxu0 0.0
    %874 = vmatprep.subr.mxu0 0.0
    %875 = vmatpush1.msra.mxu0 0.0
    %876 = vmatprep.subr.mxu0 0.0
    %877 = vmatpush1.msra.mxu0 0.0
    %878 = vmatprep.subr.mxu0 0.0
    %879 = vmatpush1.msra.mxu0 0.0
    %880 = vmatprep.subr.mxu0 0.0
    %881 = vmatpush1.msra.mxu0 0.0
    %882 = vmatprep.subr.mxu0 0.0
    %883 = vmatpush1.msra.mxu0 0.0
    %884 = vmatprep.subr.mxu0 0.0
    %885 = vmatpush1.msra.mxu0 0.0
    %886 = vmatprep.subr.mxu0 0.0
    %887 = vmatpush1.msra.mxu0 0.0
    %888 = vmatprep.subr.mxu0 0.0
    %889 = vmatpush1.msra.mxu0 0.0
    %890 = vmatprep.subr.mxu0 0.0
    %891 = vmatpush1.msra.mxu0 0.0
    %892 = vmatprep.subr.mxu0 0.0
    %893 = vmatpush1.msra.mxu0 0.0
    %894 = vmatprep.subr.mxu0 0.0
    %895 = vmatpush1.msra.mxu0 0.0
    %896 = vmatprep.subr.mxu0 0.0
    %897 = vmatpush1.msra.mxu0 0.0
    %898 = vmatprep.subr.mxu0 0.0
    %899 = vmatpush1.msra.mxu0 0.0
    %900 = vmatprep.subr.mxu0 0.0
    %901 = vmatpush1.msra.mxu0 0.0
    %902 = vmatprep.subr.mxu0 0.0
    %903 = vmatpush1.msra.mxu0 0.0
    %904 = vmatprep.subr.mxu0 0.0
    %905 = vmatpush1.msra.mxu0 0.0
    %906 = vmatprep.subr.mxu0 0.0
    %907 = vmatpush1.msra.mxu0 0.0
    %908 = vmatprep.subr.mxu0 0.0
    %909 = vmatpush1.msra.mxu0 0.0
    %910 = vmatprep.subr.mxu0 0.0
    %911 = vmatpush1.msra.mxu0 0.0
    %912 = vmatprep.mubr.f32.mxu0 0.0
    %913 = vmatmul.mubr.f32.gmra.mrb[0].mxu0 %v846
    %v914 = vpop.f32.mrb[0].mxu0
    %v915 = vadd.f32 %v842, %v914
    %v916 = vpop.f32.mrb[0].mxu0
    %917 = vdwg.mxu0
    %v918 = vmax.f32 %v915, 0.0
    %v919 = vpack.c.bf16 %v918, %v918
    %v920 = vld [vmem:[%s8] sm:$0xff]
    %v921 = vld [vmem:[%s8 + $0x8] sm:$0xff]
    %v922 = vld [vmem:[%s8 + $0x10] sm:$0xff]
    %v923 = vld [vmem:[%s8 + $0x18] sm:$0xff]
    %v924 = vld [vmem:[%s8 + $0x20] sm:$0xff]
    %v925 = vld [vmem:[%s8 + $0x28] sm:$0xff]
    %v926 = vld [vmem:[%s8 + $0x30] sm:$0xff]
    %v927 = vld [vmem:[%s8 + $0x38] sm:$0xff]
    %v928 = vld [vmem:[%s8 + $0x40] sm:$0xff]
    %v929 = vld [vmem:[%s8 + $0x48] sm:$0xff]
    %v930 = vld [vmem:[%s8 + $0x50] sm:$0xff]
    %v931 = vld [vmem:[%s8 + $0x58] sm:$0xff]
    %v932 = vld [vmem:[%s8 + $0x60] sm:$0xff]
    %v933 = vld [vmem:[%s8 + $0x68] sm:$0xff]
    %v934 = vld [vmem:[%s8 + $0x70] sm:$0xff]
    %v935 = vld [vmem:[%s8 + $0x78] sm:$0xff]
    %v936 = vld [vmem:[%s9] sm:$0xff]
    %v938 = vlaneseq
    %v939 = vshrl.u32 %v938, 7
    %v940 = vsub.s32 0, %v939
    %v941 = vrot.slane %v936, %v940
    %v942 = vlaneseq
    %v943 = vshrl.u32 %v942, 7
    %v944 = vsub.s32 1, %v943
    %v945 = vrot.slane %v936, %v944
    %v946 = vlaneseq
    %v947 = vshrl.u32 %v946, 7
    %v948 = vsub.s32 2, %v947
    %v949 = vrot.slane %v936, %v948
    %v950 = vlaneseq
    %v951 = vshrl.u32 %v950, 7
    %v952 = vsub.s32 3, %v951
    %v953 = vrot.slane %v936, %v952
    %v954 = vlaneseq
    %v955 = vshrl.u32 %v954, 7
    %v956 = vsub.s32 4, %v955
    %v957 = vrot.slane %v936, %v956
    %v958 = vlaneseq
    %v959 = vshrl.u32 %v958, 7
    %v960 = vsub.s32 5, %v959
    %v961 = vrot.slane %v936, %v960
    %v962 = vlaneseq
    %v963 = vshrl.u32 %v962, 7
    %v964 = vsub.s32 6, %v963
    %v965 = vrot.slane %v936, %v964
    %v966 = vlaneseq
    %v967 = vshrl.u32 %v966, 7
    %v968 = vsub.s32 7, %v967
    %v969 = vrot.slane %v936, %v968
    %v994 = vunpack.c.l.b16 %v920
    %v995 = vunpack.c.h.b16 %v920
    %v996 = vunpack.c.l.b16 %v921
    %v997 = vunpack.c.h.b16 %v921
    %v998 = vunpack.c.l.b16 %v922
    %v999 = vunpack.c.h.b16 %v922
    %v1000 = vunpack.c.l.b16 %v923
    %v1001 = vunpack.c.h.b16 %v923
    %v1002 = vunpack.c.l.b16 %v924
    %v1003 = vunpack.c.h.b16 %v924
    %v1004 = vunpack.c.l.b16 %v925
    %v1005 = vunpack.c.h.b16 %v925
    %v1006 = vunpack.c.l.b16 %v926
    %v1007 = vunpack.c.h.b16 %v926
    %v1008 = vunpack.c.l.b16 %v927
    %v1009 = vunpack.c.h.b16 %v927
    %v1010 = vunpack.c.l.b16 %v928
    %v1011 = vunpack.c.h.b16 %v928
    %v1012 = vunpack.c.l.b16 %v929
    %v1013 = vunpack.c.h.b16 %v929
    %v1014 = vunpack.c.l.b16 %v930
    %v1015 = vunpack.c.h.b16 %v930
    %v1016 = vunpack.c.l.b16 %v931
    %v1017 = vunpack.c.h.b16 %v931
    %v1018 = vunpack.c.l.b16 %v932
    %v1019 = vunpack.c.h.b16 %v932
    %v1020 = vunpack.c.l.b16 %v933
    %v1021 = vunpack.c.h.b16 %v933
    %v1022 = vunpack.c.l.b16 %v934
    %v1023 = vunpack.c.h.b16 %v934
    %v1024 = vunpack.c.l.b16 %v935
    %v1025 = vunpack.c.h.b16 %v935
    %v1026 = vpack.c.b16 %v1002, %v994
    %v1027 = vpack.c.b16 %v1003, %v995
    %v1028 = vpack.c.b16 %v1004, %v996
    %v1029 = vpack.c.b16 %v1005, %v997
    %v1030 = vpack.c.b16 %v1006, %v998
    %v1031 = vpack.c.b16 %v1007, %v999
    %v1032 = vpack.c.b16 %v1008, %v1000
    %v1033 = vpack.c.b16 %v1009, %v1001
    %v1034 = vpack.c.b16 %v1018, %v1010
    %v1035 = vpack.c.b16 %v1019, %v1011
    %v1036 = vpack.c.b16 %v1020, %v1012
    %v1037 = vpack.c.b16 %v1021, %v1013
    %v1038 = vpack.c.b16 %v1022, %v1014
    %v1039 = vpack.c.b16 %v1023, %v1015
    %v1040 = vpack.c.b16 %v1024, %v1016
    %v1041 = vpack.c.b16 %v1025, %v1017
    %v1059 = vsel %vm747, %v919, 0
    %1061 = vmatprep.subr.bf16.mxu0 %v1027
    %1062 = vmatpush1.bf16.msra.mxu0 %v1026
    %1063 = vmatprep.subr.bf16.mxu0 %v1035
    %1064 = vmatpush1.bf16.msra.mxu0 %v1034
    %1065 = vmatprep.subr.bf16.mxu0 0
    %1066 = vmatpush1.bf16.msra.mxu0 0
    %1067 = vmatprep.subr.bf16.mxu0 0
    %1068 = vmatpush1.bf16.msra.mxu0 0
    %1069 = vmatprep.subr.bf16.mxu0 0
    %1070 = vmatpush1.bf16.msra.mxu0 0
    %1071 = vmatprep.subr.bf16.mxu0 0
    %1072 = vmatpush1.bf16.msra.mxu0 0
    %1073 = vmatprep.subr.bf16.mxu0 0
    %1074 = vmatpush1.bf16.msra.mxu0 0
    %1075 = vmatprep.subr.bf16.mxu0 0
    %1076 = vmatpush1.bf16.msra.mxu0 0
    %1077 = vmatprep.subr.bf16.mxu0 0
    %1078 = vmatpush1.bf16.msra.mxu0 0
    %1079 = vmatprep.subr.bf16.mxu0 0
    %1080 = vmatpush1.bf16.msra.mxu0 0
    %1081 = vmatprep.subr.bf16.mxu0 0
    %1082 = vmatpush1.bf16.msra.mxu0 0
    %1083 = vmatprep.subr.bf16.mxu0 0
    %1084 = vmatpush1.bf16.msra.mxu0 0
    %1085 = vmatprep.subr.bf16.mxu0 0
    %1086 = vmatpush1.bf16.msra.mxu0 0
    %1087 = vmatprep.subr.bf16.mxu0 0
    %1088 = vmatpush1.bf16.msra.mxu0 0
    %1089 = vmatprep.subr.bf16.mxu0 0
    %1090 = vmatpush1.bf16.msra.mxu0 0
    %1091 = vmatprep.subr.bf16.mxu0 0
    %1092 = vmatpush1.bf16.msra.mxu0 0
    %1093 = vmatprep.mubr.bf16.mxu0 0
    %1094 = vmatmul.mubr.bf16.gmra.mrb[0].mxu0 %v1059
    %v1095 = vpop.f32.mrb[0].mxu0
    %v1096 = vadd.f32 %v941, %v1095
    %v1097 = vpop.f32.mrb[0].mxu0
    %v1098 = vadd.f32 %v945, %v1097
    %v1099 = vpop.f32.mrb[0].mxu0
    %v1100 = vpop.f32.mrb[0].mxu0
    %1101 = vdwg.mxu0
    %1102 = vmatprep.subr.bf16.mxu0 %v1029
    %1103 = vmatpush1.bf16.msra.mxu0 %v1028
    %1104 = vmatprep.subr.bf16.mxu0 %v1037
    %1105 = vmatpush1.bf16.msra.mxu0 %v1036
    %1106 = vmatprep.subr.bf16.mxu0 0
    %1107 = vmatpush1.bf16.msra.mxu0 0
    %1108 = vmatprep.subr.bf16.mxu0 0
    %1109 = vmatpush1.bf16.msra.mxu0 0
    %1110 = vmatprep.subr.bf16.mxu0 0
    %1111 = vmatpush1.bf16.msra.mxu0 0
    %1112 = vmatprep.subr.bf16.mxu0 0
    %1113 = vmatpush1.bf16.msra.mxu0 0
    %1114 = vmatprep.subr.bf16.mxu0 0
    %1115 = vmatpush1.bf16.msra.mxu0 0
    %1116 = vmatprep.subr.bf16.mxu0 0
    %1117 = vmatpush1.bf16.msra.mxu0 0
    %1118 = vmatprep.subr.bf16.mxu0 0
    %1119 = vmatpush1.bf16.msra.mxu0 0
    %1120 = vmatprep.subr.bf16.mxu0 0
    %1121 = vmatpush1.bf16.msra.mxu0 0
    %1122 = vmatprep.subr.bf16.mxu0 0
    %1123 = vmatpush1.bf16.msra.mxu0 0
    %1124 = vmatprep.subr.bf16.mxu0 0
    %1125 = vmatpush1.bf16.msra.mxu0 0
    %1126 = vmatprep.subr.bf16.mxu0 0
    %1127 = vmatpush1.bf16.msra.mxu0 0
    %1128 = vmatprep.subr.bf16.mxu0 0
    %1129 = vmatpush1.bf16.msra.mxu0 0
    %1130 = vmatprep.subr.bf16.mxu0 0
    %1131 = vmatpush1.bf16.msra.mxu0 0
    %1132 = vmatprep.subr.bf16.mxu0 0
    %1133 = vmatpush1.bf16.msra.mxu0 0
    %1134 = vmatprep.mubr.bf16.mxu0 0
    %1135 = vmatmul.mubr.bf16.gmra.mrb[0].mxu0 %v1059
    %v1136 = vpop.f32.mrb[0].mxu0
    %v1137 = vadd.f32 %v949, %v1136
    %v1138 = vpop.f32.mrb[0].mxu0
    %v1139 = vadd.f32 %v953, %v1138
    %v1140 = vpop.f32.mrb[0].mxu0
    %v1141 = vpop.f32.mrb[0].mxu0
    %1142 = vdwg.mxu0
    %1143 = vmatprep.subr.bf16.mxu0 %v1031
    %1144 = vmatpush1.bf16.msra.mxu0 %v1030
    %1145 = vmatprep.subr.bf16.mxu0 %v1039
    %1146 = vmatpush1.bf16.msra.mxu0 %v1038
    %1147 = vmatprep.subr.bf16.mxu0 0
    %1148 = vmatpush1.bf16.msra.mxu0 0
    %1149 = vmatprep.subr.bf16.mxu0 0
    %1150 = vmatpush1.bf16.msra.mxu0 0
    %1151 = vmatprep.subr.bf16.mxu0 0
    %1152 = vmatpush1.bf16.msra.mxu0 0
    %1153 = vmatprep.subr.bf16.mxu0 0
    %1154 = vmatpush1.bf16.msra.mxu0 0
    %1155 = vmatprep.subr.bf16.mxu0 0
    %1156 = vmatpush1.bf16.msra.mxu0 0
    %1157 = vmatprep.subr.bf16.mxu0 0
    %1158 = vmatpush1.bf16.msra.mxu0 0
    %1159 = vmatprep.subr.bf16.mxu0 0
    %1160 = vmatpush1.bf16.msra.mxu0 0
    %1161 = vmatprep.subr.bf16.mxu0 0
    %1162 = vmatpush1.bf16.msra.mxu0 0
    %1163 = vmatprep.subr.bf16.mxu0 0
    %1164 = vmatpush1.bf16.msra.mxu0 0
    %1165 = vmatprep.subr.bf16.mxu0 0
    %1166 = vmatpush1.bf16.msra.mxu0 0
    %1167 = vmatprep.subr.bf16.mxu0 0
    %1168 = vmatpush1.bf16.msra.mxu0 0
    %1169 = vmatprep.subr.bf16.mxu0 0
    %1170 = vmatpush1.bf16.msra.mxu0 0
    %1171 = vmatprep.subr.bf16.mxu0 0
    %1172 = vmatpush1.bf16.msra.mxu0 0
    %1173 = vmatprep.subr.bf16.mxu0 0
    %1174 = vmatpush1.bf16.msra.mxu0 0
    %1175 = vmatprep.mubr.bf16.mxu0 0
    %1176 = vmatmul.mubr.bf16.gmra.mrb[0].mxu0 %v1059
    %v1177 = vpop.f32.mrb[0].mxu0
    %v1178 = vadd.f32 %v957, %v1177
    %v1179 = vpop.f32.mrb[0].mxu0
    %v1180 = vadd.f32 %v961, %v1179
    %v1181 = vpop.f32.mrb[0].mxu0
    %v1182 = vpop.f32.mrb[0].mxu0
    %1183 = vdwg.mxu0
    %1184 = vmatprep.subr.bf16.mxu0 %v1033
    %1185 = vmatpush1.bf16.msra.mxu0 %v1032
    %1186 = vmatprep.subr.bf16.mxu0 %v1041
    %1187 = vmatpush1.bf16.msra.mxu0 %v1040
    %1188 = vmatprep.subr.bf16.mxu0 0
    %1189 = vmatpush1.bf16.msra.mxu0 0
    %1190 = vmatprep.subr.bf16.mxu0 0
    %1191 = vmatpush1.bf16.msra.mxu0 0
    %1192 = vmatprep.subr.bf16.mxu0 0
    %1193 = vmatpush1.bf16.msra.mxu0 0
    %1194 = vmatprep.subr.bf16.mxu0 0
    %1195 = vmatpush1.bf16.msra.mxu0 0
    %1196 = vmatprep.subr.bf16.mxu0 0
    %1197 = vmatpush1.bf16.msra.mxu0 0
    %1198 = vmatprep.subr.bf16.mxu0 0
    %1199 = vmatpush1.bf16.msra.mxu0 0
    %1200 = vmatprep.subr.bf16.mxu0 0
    %1201 = vmatpush1.bf16.msra.mxu0 0
    %1202 = vmatprep.subr.bf16.mxu0 0
    %1203 = vmatpush1.bf16.msra.mxu0 0
    %1204 = vmatprep.subr.bf16.mxu0 0
    %1205 = vmatpush1.bf16.msra.mxu0 0
    %1206 = vmatprep.subr.bf16.mxu0 0
    %1207 = vmatpush1.bf16.msra.mxu0 0
    %1208 = vmatprep.subr.bf16.mxu0 0
    %1209 = vmatpush1.bf16.msra.mxu0 0
    %1210 = vmatprep.subr.bf16.mxu0 0
    %1211 = vmatpush1.bf16.msra.mxu0 0
    %1212 = vmatprep.subr.bf16.mxu0 0
    %1213 = vmatpush1.bf16.msra.mxu0 0
    %1214 = vmatprep.subr.bf16.mxu0 0
    %1215 = vmatpush1.bf16.msra.mxu0 0
    %1216 = vmatprep.mubr.bf16.mxu0 0
    %1217 = vmatmul.mubr.bf16.gmra.mrb[0].mxu0 %v1059
    %v1218 = vpop.f32.mrb[0].mxu0
    %v1219 = vadd.f32 %v965, %v1218
    %v1220 = vpop.f32.mrb[0].mxu0
    %v1221 = vadd.f32 %v969, %v1220
    %v1222 = vpop.f32.mrb[0].mxu0
    %v1223 = vpop.f32.mrb[0].mxu0
    %1224 = vdwg.mxu0
    %v1225 = vsub.f32 0.0, %v1096
    %v1226 = vsub.f32 0.0, %v1098
    %v1227 = vsub.f32 0.0, %v1137
    %v1228 = vsub.f32 0.0, %v1139
    %v1229 = vsub.f32 0.0, %v1178
    %v1230 = vsub.f32 0.0, %v1180
    %v1231 = vsub.f32 0.0, %v1219
    %v1232 = vsub.f32 0.0, %v1221
    %v1233 = vmul.f32 %v1225, 1.442695
    %v1234 = vpow.pop %v1233
    %v1235 = vmul.f32 %v1226, 1.442695
    %v1236 = vpow.pop %v1235
    %v1237 = vmul.f32 %v1227, 1.442695
    %v1238 = vpow.pop %v1237
    %v1239 = vmul.f32 %v1228, 1.442695
    %v1240 = vpow.pop %v1239
    %v1241 = vmul.f32 %v1229, 1.442695
    %v1242 = vpow.pop %v1241
    %v1243 = vmul.f32 %v1230, 1.442695
    %v1244 = vpow.pop %v1243
    %v1245 = vmul.f32 %v1231, 1.442695
    %v1246 = vpow.pop %v1245
    %v1247 = vmul.f32 %v1232, 1.442695
    %v1248 = vpow.pop %v1247
    %v1249 = vadd.f32 %v1234, 1.0
    %v1250 = vadd.f32 %v1236, 1.0
    %v1251 = vadd.f32 %v1238, 1.0
    %v1252 = vadd.f32 %v1240, 1.0
    %v1253 = vadd.f32 %v1242, 1.0
    %v1254 = vadd.f32 %v1244, 1.0
    %v1255 = vadd.f32 %v1246, 1.0
    %v1256 = vadd.f32 %v1248, 1.0
    %v1257 = vrcp.pop %v1249
    %v1258 = vrcp.pop %v1250
    %v1259 = vrcp.pop %v1251
    %v1260 = vrcp.pop %v1252
    %v1261 = vrcp.pop %v1253
    %v1262 = vrcp.pop %v1254
    %v1263 = vrcp.pop %v1255
    %v1264 = vrcp.pop %v1256
    %1265 = vst [vmem:[#allocation2] sm:$0xff] %v1257
    %1266 = vst [vmem:[#allocation2 + $0x8] sm:$0xff] %v1258
    %1267 = vst [vmem:[#allocation2 + $0x10] sm:$0xff] %v1259
    %1268 = vst [vmem:[#allocation2 + $0x18] sm:$0xff] %v1260
    %1269 = vst [vmem:[#allocation2 + $0x20] sm:$0xff] %v1261
    %1270 = vst [vmem:[#allocation2 + $0x28] sm:$0xff] %v1262
    %1271 = vst [vmem:[#allocation2 + $0x30] sm:$0xff] %v1263
    %1272 = vst [vmem:[#allocation2 + $0x38] sm:$0xff] %v1264
    // Predicated region
    $region42: #{tpu_custom_call.1} parent=1 // pred_check
      _
    $region43: #{tpu_custom_call.1} parent=1 // pred_check_branch
      %1274 = sbr.rel (0) target = $region45
    $region44: #{tpu_custom_call.1} parent=1 // pred_region
      %s1276 = ssub.s32 1024, 1024
      %1277 = vsyncadd [#allocation3], %s1276
      %s1279 = sshll.u32 [#allocation2], 4
      %s1280 = int_to_ptr.vmem [resolvable:$true] %s1279
      %1282 = dma.vmem_to_hbm [thread:$0]  %s1280, 1024, %s10, [#allocation3]
    $region45: #{tpu_custom_call.1} parent=1 // pred_fallthru
      _
    // Predicated region
    $region46: #{tpu_custom_call.1} parent=1 // pred_check
      _
    $region47: #{tpu_custom_call.1} parent=1 // pred_check_branch
      %1284 = sbr.rel (0) target = $region49
    $region48: #{tpu_custom_call.1} parent=1 // pred_region
      %s1286 = ssub.s32 128, 128
      %1287 = vsyncadd [#allocation5], %s1286
      %s1289 = sshll.u32 [#allocation4], 4
      %s1290 = int_to_ptr.vmem [resolvable:$true] %s1289
      %1292 = dma.vmem_to_hbm [thread:$0]  %s1290, 128, %s11, [#allocation5]
    $region49: #{tpu_custom_call.1} parent=1 // pred_fallthru
      _
    // Predicated region
    $region50: #{tpu_custom_call.1} parent=1 // pred_check
      _
    $region51: #{tpu_custom_call.1} parent=1 // pred_check_branch
      %1294 = sbr.rel (0) target = $region53
    $region52: #{tpu_custom_call.1} parent=1 // pred_region
      %1295 = dma.done [#allocation3], 1024
    $region53: #{tpu_custom_call.1} parent=1 // pred_fallthru
      _
    // Predicated region
    $region54: #{tpu_custom_call.1} parent=1 // pred_check
      _
    $region55: #{tpu_custom_call.1} parent=1 // pred_check_branch
      %1297 = sbr.rel (0) target = $region57
    $region56: #{tpu_custom_call.1} parent=1 // pred_region
      %1298 = dma.done [#allocation5], 128
    $region57: #{tpu_custom_call.1} parent=1 // pred_fallthru
      _
    %1299 = vsyncpa [#allocation3], 1
    %1300 = vsyncpa [#allocation5], 1

</llo_original>
